<compile_context>
chip_gen: v7x
topology: tpu7x:2x2x1
jax: 0.10.0
libtpu: 0.0.40
codegen_flags: <defaults>
</compile_context>

<pallas_src>
import functools

import jax
import jax.numpy as jnp
from jax.experimental import pallas as pl
from jax.experimental.pallas import tpu as pltpu


def _round_up(n, m):
    return ((n + m - 1) // m) * m


def _vmem_capacity_bytes(default=64 * 1024 * 1024):
    """Physical VMEM per TensorCore; conservative fallback if the query fails."""
    try:
        return int(getattr(pltpu.get_tpu_info(), "vmem_capacity_bytes", default))
    except Exception:
        return default


def _lr_fcn_kernel(x_ref, w1_ref, b1_ref, w2_ref, b2_ref, o_ref, *, chunk, n_chunks):
    # x_ref : (TB, IN)      batch-major x block (TB = n_chunks * chunk rows)
    # w1_ref: (HID, IN)     native PyTorch (out, in) layout
    # b1_ref: (HID, chunk)  lane-replicated bias (pre-broadcast in the wrapper)
    # w2_ref: (HID, chunk)  lane-replicated output-layer weights
    # b2_ref: (1, 1)        scalar bias in SMEM
    # o_ref : (n_chunks, chunk)  lane-dense output rows (row c = batch lanes of chunk c)
    w1 = w1_ref[...]
    b2 = b2_ref[0, 0]

    def body(c, carry):
        row0 = pl.multiple_of(c * chunk, chunk)
        x_c = x_ref[pl.ds(row0, chunk), :]                      # (chunk, IN)
        # Feature-major hidden: h[j, b] = sum_k W1[j, k] * x_c[b, k].
        # Contraction is on x's dim 1; Mosaic does the batch-major -> lane-major
        # relayout in-kernel, hidden under the HBM DMA of the next x block.
        h = jax.lax.dot_general(
            w1, x_c, (((1,), (1,)), ((), ())),
            preferred_element_type=jnp.float32)                 # (HID, chunk)
        h = jnp.maximum(h + b1_ref[...], 0.0)                   # bias + ReLU (VPU)
        # Linear(15 -> 1): VPU multiply + sublane (XLU) reduce; batch lanes stay
        # dense and independent (garbage lanes of a partial block never mix in).
        o = jnp.sum(h * w2_ref[...], axis=0, keepdims=True) + b2    # (1, chunk)
        o_ref[pl.ds(c, 1), :] = o.astype(o_ref.dtype)
        return carry

    if n_chunks <= 4:
        unroll = True
    elif n_chunks % 2 == 0:
        unroll = 2
    else:
        unroll = 1
    jax.lax.fori_loop(0, n_chunks, body, 0, unroll=unroll)


def lr_fcn_forward(x, w1, b1, w2, b2, *, max_batch_tile=24576, lane_chunk=1024):
    """x: (B, 31); w1: (15, 31); b1: (15,); w2: (1, 15); b2: (1,). Returns (B, 1)."""
    B, IN = x.shape
    HID = w1.shape[0]
    CH = lane_chunk                          # batch lanes per in-kernel chunk (mult of 128)
    itemsize = jnp.dtype(x.dtype).itemsize
    row_vmem_bytes = 128 * itemsize          # (rows, 31) blocks are lane-padded to 128 in VMEM

    # --- VMEM-aware batch tile (rows per grid step) --------------------------------
    vmem_cap = _vmem_capacity_bytes()
    x_budget = min(24 * 1024 * 1024, vmem_cap // 3)      # double-buffered x budget (v7x-safe)
    tb_cap = min(max_batch_tile, max(CH, x_budget // (2 * row_vmem_bytes)))
    if B > tb_cap:
        # Multiple grid steps: keep n_chunks a multiple of 8 so the (n_chunks, CH)
        # output block satisfies the (8, 128) tiling rule, and keep >= 2 steps so
        # v7x can shard them across both TensorCores via the "parallel" grid axis.
        TB = max(8 * CH, (tb_cap // (8 * CH)) * (8 * CH))
    else:
        TB = _round_up(max(B, 1), CH)        # single step: out block == full array dims
    NCHUNK = TB // CH
    num_tiles = pl.cdiv(B, TB)

    # --- Small parameters (pre-broadcast so the kernel does no lane broadcasts) ----
    w1c = w1.astype(x.dtype)                                         # match MXU operand dtype
    b1_b = jnp.broadcast_to(b1.astype(jnp.float32).reshape(HID, 1), (HID, CH))
    w2_b = jnp.broadcast_to(w2.astype(jnp.float32).reshape(HID, 1), (HID, CH))
    b2_s = b2.reshape(1, 1).astype(jnp.float32)                      # scalar, lives in SMEM

    kernel = functools.partial(_lr_fcn_kernel, chunk=CH, n_chunks=NCHUNK)

    vmem_limit = int(min(vmem_cap,
                         max(32 * 1024 * 1024,
                             2 * TB * row_vmem_bytes + 16 * 1024 * 1024)))

    bytes_accessed = (B * IN * itemsize                       # x, read once in-kernel
                      + num_tiles * NCHUNK * CH * itemsize    # output rows
                      + (HID * IN + 2 * HID * CH + 1) * 4)    # parameters

    out = pl.pallas_call(
        kernel,
        out_shape=jax.ShapeDtypeStruct((num_tiles * NCHUNK, CH), x.dtype),
        grid=(num_tiles,),
        in_specs=[
            pl.BlockSpec((TB, IN), lambda i: (i, 0)),      # x batch tile (batch-major)
            pl.BlockSpec((HID, IN), lambda i: (0, 0)),     # W1 (full array)
            pl.BlockSpec((HID, CH), lambda i: (0, 0)),     # b1, lane-replicated
            pl.BlockSpec((HID, CH), lambda i: (0, 0)),     # W2, lane-replicated
            pl.BlockSpec(memory_space=pltpu.SMEM),         # b2 scalar
        ],
        out_specs=pl.BlockSpec((NCHUNK, CH), lambda i: (i, 0)),
        compiler_params=pltpu.CompilerParams(
            dimension_semantics=("parallel",),             # shard batch tiles over TCs
            vmem_limit_bytes=vmem_limit,
        ),
        cost_estimate=pl.CostEstimate(
            flops=2 * B * HID * (IN + 1),
            transcendentals=0,
            bytes_accessed=int(bytes_accessed),
        ),
    )(x, w1c, b1_b, w2_b, b2_s)

    # Row r, lane l of `out` is batch element r*CH + l; rows past B come from the
    # partially-valid last block (stale VMEM) and are sliced off here.
    return out.reshape(-1)[:B].reshape(B, 1)


def lr_fcn_reference(x, w1, b1, w2, b2):
    h = jnp.maximum(x @ w1.T + b1, 0.0)
    return h @ w2.T + b2


if __name__ == "__main__":
    key = jax.random.PRNGKey(0)
    k_x, k_w1, k_b1, k_w2, k_b2 = jax.random.split(key, 5)

    B = 8
    IN, HID, OUT = 31, 15, 1  # layers = [31, 15], output dim 1

    # Deterministic PyTorch-style uniform(-1/sqrt(fan_in), +1/sqrt(fan_in)) init.
    bound1 = 1.0 / jnp.sqrt(IN)
    bound2 = 1.0 / jnp.sqrt(HID)
    x = jax.random.normal(k_x, (B, IN), dtype=jnp.float32)
    w1 = jax.random.uniform(k_w1, (HID, IN), jnp.float32, -bound1, bound1)
    b1 = jax.random.uniform(k_b1, (HID,), jnp.float32, -bound1, bound1)
    w2 = jax.random.uniform(k_w2, (OUT, HID), jnp.float32, -bound2, bound2)
    b2 = jax.random.uniform(k_b2, (OUT,), jnp.float32, -bound2, bound2)

    # jit the wrapper so the tiny pre/post reshapes fuse with dispatch.
    fwd = jax.jit(lr_fcn_forward)
    out = jax.block_until_ready(fwd(x, w1, b1, w2, b2))

    ref = lr_fcn_reference(x, w1, b1, w2, b2)
    assert out.shape == (B, 1), out.shape
    assert jnp.allclose(out, ref, atol=1e-5, rtol=1e-5), (
        f"max abs err {jnp.max(jnp.abs(out - ref))}"
    )
    print("KERNEL_OK")
</pallas_src>

<mosaic_0001>
module attributes {stable_mosaic.version = 11 : i64} {
  func.func @_lr_fcn_kernel(%arg0: i32, %arg1: memref<1024x31xf32, #tpu.memory_space<vmem>>, %arg2: memref<15x31xf32, #tpu.memory_space<vmem>>, %arg3: memref<15x1024xf32, #tpu.memory_space<vmem>>, %arg4: memref<15x1024xf32, #tpu.memory_space<vmem>>, %arg5: memref<1x1xf32, #tpu.memory_space<smem>>, %arg6: memref<1x1024xf32, #tpu.memory_space<vmem>>) attributes {dimension_semantics = [#tpu.dimension_semantics<parallel>], iteration_bounds = array<i64: 1>, scalar_prefetch = 0 : i64, scratch_operands = 0 : i64, tpu.core_type = #tpu.core_type<tc>, window_params = [{transform_indices = @transform_0, window_bounds = array<i64: 1024, 31>}, {pipeline_mode = #tpu.pipeline_mode<synchronous>, transform_indices = @transform_1, window_bounds = array<i64: 15, 31>}, {pipeline_mode = #tpu.pipeline_mode<synchronous>, transform_indices = @transform_2, window_bounds = array<i64: 15, 1024>}, {pipeline_mode = #tpu.pipeline_mode<synchronous>, transform_indices = @transform_3, window_bounds = array<i64: 15, 1024>}, {transform_indices = @transform_4, window_bounds = array<i64: 1, 1>}, {transform_indices = @transform_5, window_bounds = array<i64: 1, 1024>}]} {
    %c0 = arith.constant 0 : index
    %c0_0 = arith.constant 0 : index
    %0 = vector.load %arg2[%c0, %c0_0] : memref<15x31xf32, #tpu.memory_space<vmem>>, vector<15x31xf32>
    %c0_1 = arith.constant 0 : index
    %c0_2 = arith.constant 0 : index
    %1 = memref.load %arg5[%c0_1, %c0_2] : memref<1x1xf32, #tpu.memory_space<smem>>
    %c0_i32 = arith.constant 0 : i32
    %c1024_i32 = arith.constant 1024 : i32
    %2 = arith.muli %c0_i32, %c1024_i32 : i32
    %3 = tpu.assume_multiple %2, 1024 : i32
    %4 = arith.index_cast %3 : i32 to index
    %c0_3 = arith.constant 0 : index
    %5 = vector.load %arg1[%4, %c0_3] : memref<1024x31xf32, #tpu.memory_space<vmem>>, vector<1024x31xf32>
    %cst = arith.constant dense<0.000000e+00> : vector<15x1024xf32>
    %6 = tpu.matmul %0, %5, %cst {dimension_numbers = #tpu.dot_dimension_numbers<[1], [1], [0], [0], [0, 0, 1, 0], [], []>} : vector<15x31xf32>, vector<1024x31xf32>, vector<15x1024xf32> -> vector<15x1024xf32>
    %c0_4 = arith.constant 0 : index
    %c0_5 = arith.constant 0 : index
    %7 = vector.load %arg3[%c0_4, %c0_5] : memref<15x1024xf32, #tpu.memory_space<vmem>>, vector<15x1024xf32>
    %8 = arith.addf %6, %7 : vector<15x1024xf32>
    %cst_6 = arith.constant 0.000000e+00 : f32
    %9 = vector.broadcast %cst_6 : f32 to vector<15x1024xf32>
    %10 = arith.maximumf %8, %9 : vector<15x1024xf32>
    %c0_7 = arith.constant 0 : index
    %c0_8 = arith.constant 0 : index
    %11 = vector.load %arg4[%c0_7, %c0_8] : memref<15x1024xf32, #tpu.memory_space<vmem>>, vector<15x1024xf32>
    %12 = arith.mulf %10, %11 : vector<15x1024xf32>
    %cst_9 = arith.constant dense<0.000000e+00> : vector<1024xf32>
    %13 = vector.multi_reduction <add>, %12, %cst_9 [0] : vector<15x1024xf32> to vector<1024xf32>
    %14 = vector.shape_cast %13 : vector<1024xf32> to vector<1x1024xf32>
    %15 = vector.broadcast %1 : f32 to vector<1x1024xf32>
    %16 = arith.addf %14, %15 : vector<1x1024xf32>
    %17 = arith.index_cast %c0_i32 : i32 to index
    %c0_10 = arith.constant 0 : index
    %18 = vector.load %arg6[%17, %c0_10] : memref<1x1024xf32, #tpu.memory_space<vmem>>, vector<1x1024xf32>
    tpu.vector_store %arg6[%17, %c0_10], %16 {strides = array<i32>} : memref<1x1024xf32, #tpu.memory_space<vmem>>, vector<1x1024xf32>,
    %c1_i32 = arith.constant 1 : i32
    return
  }
  func.func @transform_0(%arg0: i32) -> (i32, i32) {
    %c0_i32 = arith.constant 0 : i32
    %c0_i32_0 = arith.constant 0 : i32
    return %arg0, %c0_i32 : i32, i32
  }
  func.func @transform_1(%arg0: i32) -> (i32, i32) {
    %c0_i32 = arith.constant 0 : i32
    %c0_i32_0 = arith.constant 0 : i32
    %c0_i32_1 = arith.constant 0 : i32
    return %c0_i32, %c0_i32_0 : i32, i32
  }
  func.func @transform_2(%arg0: i32) -> (i32, i32) {
    %c0_i32 = arith.constant 0 : i32
    %c0_i32_0 = arith.constant 0 : i32
    %c0_i32_1 = arith.constant 0 : i32
    return %c0_i32, %c0_i32_0 : i32, i32
  }
  func.func @transform_3(%arg0: i32) -> (i32, i32) {
    %c0_i32 = arith.constant 0 : i32
    %c0_i32_0 = arith.constant 0 : i32
    %c0_i32_1 = arith.constant 0 : i32
    return %c0_i32, %c0_i32_0 : i32, i32
  }
  func.func @transform_4(%arg0: i32) -> (i32, i32) {
    %c0_i32 = arith.constant 0 : i32
    %c0_i32_0 = arith.constant 0 : i32
    %c0_i32_1 = arith.constant 0 : i32
    return %c0_i32, %c0_i32_0 : i32, i32
  }
  func.func @transform_5(%arg0: i32) -> (i32, i32) {
    %c0_i32 = arith.constant 0 : i32
    %c0_i32_0 = arith.constant 0 : i32
    return %arg0, %c0_i32 : i32, i32
  }
}

</mosaic_0001>

<llo_original>
// kernel: lr_fcn_forward.1
$region0: #{lr_fcn_forward.1}
  #allocation0 [shape = 'u32[]', space=smem, size = 0x4, offset = 0x4, fixed_abs, tag = 'smem constant byte address 0x4 - core index']
  #allocation1 [shape = 'u32[144,128]{1,0:T(1,128)}', space=vmem, size = 0x12000, scoped, tag = 'internal scratch']
  #allocation2 [shape = 'f32[1,1]{1,0:T(1,128)S(6)}', space=smem, size = 0x200, scoped, tag = 'scoped memory for lr_fcn_forward.1']
  %s0 = inlined_call_operand.vmem [shape: f32[8,31], index: 0, kind: input, shape index: {}]
  %s1 = inlined_call_operand.vmem [shape: f32[15,31], index: 1, kind: input, shape index: {}]
  %s2 = inlined_call_operand.vmem [shape: f32[15,1024], index: 2, kind: input, shape index: {}]
  %s3 = inlined_call_operand.vmem [shape: f32[15,1024], index: 3, kind: input, shape index: {}]
  %s4 = inlined_call_operand.<no memory space> [shape: f32[1,1], index: 4, kind: input, shape index: {}]
  %s5 = inlined_call_operand.vmem [shape: f32[1,1024], index: 5, kind: output, shape index: {}]
  %s6 = sld [smem:[#allocation0]]
  $region30: #{lr_fcn_forward.1} parent=0
    _
  %s8 = ssub.s32 1, %s6
  %s9 = scalar_select 0, %s8, %s6
  %10 = sst [smem:[#allocation2]] %s4
  // Predicated region
  $region2: #{lr_fcn_forward.1} parent=0 // pred_check
    _
  $region3: #{lr_fcn_forward.1} parent=0 // pred_check_branch
    %12 = sbr.rel (0) target = $region5
  $region4: #{lr_fcn_forward.1} parent=0 // pred_region
    _
  $region5: #{lr_fcn_forward.1} parent=0 // pred_fallthru
    _
  // Predicated region
  $region6: #{lr_fcn_forward.1} parent=0 // pred_check
    _
  $region7: #{lr_fcn_forward.1} parent=0 // pred_check_branch
    %14 = sbr.rel (0) target = $region9
  $region8: #{lr_fcn_forward.1} parent=0 // pred_region
    _
  $region9: #{lr_fcn_forward.1} parent=0 // pred_fallthru
    _
  // Predicated region
  $region10: #{lr_fcn_forward.1} parent=0 // pred_check
    _
  $region11: #{lr_fcn_forward.1} parent=0 // pred_check_branch
    %16 = sbr.rel (0) target = $region13
  $region12: #{lr_fcn_forward.1} parent=0 // pred_region
    _
  $region13: #{lr_fcn_forward.1} parent=0 // pred_fallthru
    _
  // Predicated region
  $region14: #{lr_fcn_forward.1} parent=0 // pred_check
    _
  $region15: #{lr_fcn_forward.1} parent=0 // pred_check_branch
    %18 = sbr.rel (0) target = $region17
  $region16: #{lr_fcn_forward.1} parent=0 // pred_region
    _
  $region17: #{lr_fcn_forward.1} parent=0 // pred_fallthru
    _
  // Predicated region
  $region18: #{lr_fcn_forward.1} parent=0 // pred_check
    _
  $region19: #{lr_fcn_forward.1} parent=0 // pred_check_branch
    %20 = sbr.rel (0) target = $region21
  $region20: #{lr_fcn_forward.1} parent=0 // pred_region
    _
  $region21: #{lr_fcn_forward.1} parent=0 // pred_fallthru
    _
  %v21 = vld [vmem:[%s1] sm:$0xff]
  %v22 = vld [vmem:[%s1 + $0x8] sm:$0x7f]
  %s23 = sld [smem:[#allocation2]]
  %v24 = vld [vmem:[%s0] sm:$0xff]
  %v25 = vld [vmem:[%s0 + $0x8] sm:$0xff]
  %v26 = vld [vmem:[%s0 + $0x10] sm:$0xff]
  %v27 = vld [vmem:[%s0 + $0x18] sm:$0xff]
  %v28 = vld [vmem:[%s0 + $0x20] sm:$0xff]
  %v29 = vld [vmem:[%s0 + $0x28] sm:$0xff]
  %v30 = vld [vmem:[%s0 + $0x30] sm:$0xff]
  %v31 = vld [vmem:[%s0 + $0x38] sm:$0xff]
  %v32 = vld [vmem:[%s0 + $0x40] sm:$0xff]
  %v33 = vld [vmem:[%s0 + $0x48] sm:$0xff]
  %v34 = vld [vmem:[%s0 + $0x50] sm:$0xff]
  %v35 = vld [vmem:[%s0 + $0x58] sm:$0xff]
  %v36 = vld [vmem:[%s0 + $0x60] sm:$0xff]
  %v37 = vld [vmem:[%s0 + $0x68] sm:$0xff]
  %v38 = vld [vmem:[%s0 + $0x70] sm:$0xff]
  %v39 = vld [vmem:[%s0 + $0x78] sm:$0xff]
  %v40 = vld [vmem:[%s0 + $0x80] sm:$0xff]
  %v41 = vld [vmem:[%s0 + $0x88] sm:$0xff]
  %v42 = vld [vmem:[%s0 + $0x90] sm:$0xff]
  %v43 = vld [vmem:[%s0 + $0x98] sm:$0xff]
  %v44 = vld [vmem:[%s0 + $0xa0] sm:$0xff]
  %v45 = vld [vmem:[%s0 + $0xa8] sm:$0xff]
  %v46 = vld [vmem:[%s0 + $0xb0] sm:$0xff]
  %v47 = vld [vmem:[%s0 + $0xb8] sm:$0xff]
  %v48 = vld [vmem:[%s0 + $0xc0] sm:$0xff]
  %v49 = vld [vmem:[%s0 + $0xc8] sm:$0xff]
  %v50 = vld [vmem:[%s0 + $0xd0] sm:$0xff]
  %v51 = vld [vmem:[%s0 + $0xd8] sm:$0xff]
  %v52 = vld [vmem:[%s0 + $0xe0] sm:$0xff]
  %v53 = vld [vmem:[%s0 + $0xe8] sm:$0xff]
  %v54 = vld [vmem:[%s0 + $0xf0] sm:$0xff]
  %v55 = vld [vmem:[%s0 + $0xf8] sm:$0xff]
  %v56 = vld [vmem:[%s0 + $0x100] sm:$0xff]
  %v57 = vld [vmem:[%s0 + $0x108] sm:$0xff]
  %v58 = vld [vmem:[%s0 + $0x110] sm:$0xff]
  %v59 = vld [vmem:[%s0 + $0x118] sm:$0xff]
  %v60 = vld [vmem:[%s0 + $0x120] sm:$0xff]
  %v61 = vld [vmem:[%s0 + $0x128] sm:$0xff]
  %v62 = vld [vmem:[%s0 + $0x130] sm:$0xff]
  %v63 = vld [vmem:[%s0 + $0x138] sm:$0xff]
  %v64 = vld [vmem:[%s0 + $0x140] sm:$0xff]
  %v65 = vld [vmem:[%s0 + $0x148] sm:$0xff]
  %v66 = vld [vmem:[%s0 + $0x150] sm:$0xff]
  %v67 = vld [vmem:[%s0 + $0x158] sm:$0xff]
  %v68 = vld [vmem:[%s0 + $0x160] sm:$0xff]
  %v69 = vld [vmem:[%s0 + $0x168] sm:$0xff]
  %v70 = vld [vmem:[%s0 + $0x170] sm:$0xff]
  %v71 = vld [vmem:[%s0 + $0x178] sm:$0xff]
  %v72 = vld [vmem:[%s0 + $0x180] sm:$0xff]
  %v73 = vld [vmem:[%s0 + $0x188] sm:$0xff]
  %v74 = vld [vmem:[%s0 + $0x190] sm:$0xff]
  %v75 = vld [vmem:[%s0 + $0x198] sm:$0xff]
  %v76 = vld [vmem:[%s0 + $0x1a0] sm:$0xff]
  %v77 = vld [vmem:[%s0 + $0x1a8] sm:$0xff]
  %v78 = vld [vmem:[%s0 + $0x1b0] sm:$0xff]
  %v79 = vld [vmem:[%s0 + $0x1b8] sm:$0xff]
  %v80 = vld [vmem:[%s0 + $0x1c0] sm:$0xff]
  %v81 = vld [vmem:[%s0 + $0x1c8] sm:$0xff]
  %v82 = vld [vmem:[%s0 + $0x1d0] sm:$0xff]
  %v83 = vld [vmem:[%s0 + $0x1d8] sm:$0xff]
  %v84 = vld [vmem:[%s0 + $0x1e0] sm:$0xff]
  %v85 = vld [vmem:[%s0 + $0x1e8] sm:$0xff]
  %v86 = vld [vmem:[%s0 + $0x1f0] sm:$0xff]
  %v87 = vld [vmem:[%s0 + $0x1f8] sm:$0xff]
  %v88 = vld [vmem:[%s0 + $0x200] sm:$0xff]
  %v89 = vld [vmem:[%s0 + $0x208] sm:$0xff]
  %v90 = vld [vmem:[%s0 + $0x210] sm:$0xff]
  %v91 = vld [vmem:[%s0 + $0x218] sm:$0xff]
  %v92 = vld [vmem:[%s0 + $0x220] sm:$0xff]
  %v93 = vld [vmem:[%s0 + $0x228] sm:$0xff]
  %v94 = vld [vmem:[%s0 + $0x230] sm:$0xff]
  %v95 = vld [vmem:[%s0 + $0x238] sm:$0xff]
  %v96 = vld [vmem:[%s0 + $0x240] sm:$0xff]
  %v97 = vld [vmem:[%s0 + $0x248] sm:$0xff]
  %v98 = vld [vmem:[%s0 + $0x250] sm:$0xff]
  %v99 = vld [vmem:[%s0 + $0x258] sm:$0xff]
  %v100 = vld [vmem:[%s0 + $0x260] sm:$0xff]
  %v101 = vld [vmem:[%s0 + $0x268] sm:$0xff]
  %v102 = vld [vmem:[%s0 + $0x270] sm:$0xff]
  %v103 = vld [vmem:[%s0 + $0x278] sm:$0xff]
  %v104 = vld [vmem:[%s0 + $0x280] sm:$0xff]
  %v105 = vld [vmem:[%s0 + $0x288] sm:$0xff]
  %v106 = vld [vmem:[%s0 + $0x290] sm:$0xff]
  %v107 = vld [vmem:[%s0 + $0x298] sm:$0xff]
  %v108 = vld [vmem:[%s0 + $0x2a0] sm:$0xff]
  %v109 = vld [vmem:[%s0 + $0x2a8] sm:$0xff]
  %v110 = vld [vmem:[%s0 + $0x2b0] sm:$0xff]
  %v111 = vld [vmem:[%s0 + $0x2b8] sm:$0xff]
  %v112 = vld [vmem:[%s0 + $0x2c0] sm:$0xff]
  %v113 = vld [vmem:[%s0 + $0x2c8] sm:$0xff]
  %v114 = vld [vmem:[%s0 + $0x2d0] sm:$0xff]
  %v115 = vld [vmem:[%s0 + $0x2d8] sm:$0xff]
  %v116 = vld [vmem:[%s0 + $0x2e0] sm:$0xff]
  %v117 = vld [vmem:[%s0 + $0x2e8] sm:$0xff]
  %v118 = vld [vmem:[%s0 + $0x2f0] sm:$0xff]
  %v119 = vld [vmem:[%s0 + $0x2f8] sm:$0xff]
  %v120 = vld [vmem:[%s0 + $0x300] sm:$0xff]
  %v121 = vld [vmem:[%s0 + $0x308] sm:$0xff]
  %v122 = vld [vmem:[%s0 + $0x310] sm:$0xff]
  %v123 = vld [vmem:[%s0 + $0x318] sm:$0xff]
  %v124 = vld [vmem:[%s0 + $0x320] sm:$0xff]
  %v125 = vld [vmem:[%s0 + $0x328] sm:$0xff]
  %v126 = vld [vmem:[%s0 + $0x330] sm:$0xff]
  %v127 = vld [vmem:[%s0 + $0x338] sm:$0xff]
  %v128 = vld [vmem:[%s0 + $0x340] sm:$0xff]
  %v129 = vld [vmem:[%s0 + $0x348] sm:$0xff]
  %v130 = vld [vmem:[%s0 + $0x350] sm:$0xff]
  %v131 = vld [vmem:[%s0 + $0x358] sm:$0xff]
  %v132 = vld [vmem:[%s0 + $0x360] sm:$0xff]
  %v133 = vld [vmem:[%s0 + $0x368] sm:$0xff]
  %v134 = vld [vmem:[%s0 + $0x370] sm:$0xff]
  %v135 = vld [vmem:[%s0 + $0x378] sm:$0xff]
  %v136 = vld [vmem:[%s0 + $0x380] sm:$0xff]
  %v137 = vld [vmem:[%s0 + $0x388] sm:$0xff]
  %v138 = vld [vmem:[%s0 + $0x390] sm:$0xff]
  %v139 = vld [vmem:[%s0 + $0x398] sm:$0xff]
  %v140 = vld [vmem:[%s0 + $0x3a0] sm:$0xff]
  %v141 = vld [vmem:[%s0 + $0x3a8] sm:$0xff]
  %v142 = vld [vmem:[%s0 + $0x3b0] sm:$0xff]
  %v143 = vld [vmem:[%s0 + $0x3b8] sm:$0xff]
  %v144 = vld [vmem:[%s0 + $0x3c0] sm:$0xff]
  %v145 = vld [vmem:[%s0 + $0x3c8] sm:$0xff]
  %v146 = vld [vmem:[%s0 + $0x3d0] sm:$0xff]
  %v147 = vld [vmem:[%s0 + $0x3d8] sm:$0xff]
  %v148 = vld [vmem:[%s0 + $0x3e0] sm:$0xff]
  %v149 = vld [vmem:[%s0 + $0x3e8] sm:$0xff]
  %v150 = vld [vmem:[%s0 + $0x3f0] sm:$0xff]
  %v151 = vld [vmem:[%s0 + $0x3f8] sm:$0xff]
  %v152 = vld [vmem:[%s2] sm:$0xff]
  %v153 = vld [vmem:[%s2 + $0x8] sm:$0xff]
  %v154 = vld [vmem:[%s2 + $0x10] sm:$0xff]
  %v155 = vld [vmem:[%s2 + $0x18] sm:$0xff]
  %v156 = vld [vmem:[%s2 + $0x20] sm:$0xff]
  %v157 = vld [vmem:[%s2 + $0x28] sm:$0xff]
  %v158 = vld [vmem:[%s2 + $0x30] sm:$0xff]
  %v159 = vld [vmem:[%s2 + $0x38] sm:$0xff]
  %v160 = vld [vmem:[%s2 + $0x40] sm:$0x7f]
  %v161 = vld [vmem:[%s2 + $0x48] sm:$0x7f]
  %v162 = vld [vmem:[%s2 + $0x50] sm:$0x7f]
  %v163 = vld [vmem:[%s2 + $0x58] sm:$0x7f]
  %v164 = vld [vmem:[%s2 + $0x60] sm:$0x7f]
  %v165 = vld [vmem:[%s2 + $0x68] sm:$0x7f]
  %v166 = vld [vmem:[%s2 + $0x70] sm:$0x7f]
  %v167 = vld [vmem:[%s2 + $0x78] sm:$0x7f]
  %vm168 = vcmask 252928
  %v170 = vsel %vm168, %v21, 0
  %v173 = vsel %vm168, %v22, 0
  %v176 = vsel %vm168, %v24, 0
  %v179 = vsel %vm168, %v25, 0
  %v182 = vsel %vm168, %v26, 0
  %v185 = vsel %vm168, %v27, 0
  %v188 = vsel %vm168, %v28, 0
  %v191 = vsel %vm168, %v29, 0
  %v194 = vsel %vm168, %v30, 0
  %v197 = vsel %vm168, %v31, 0
  %v200 = vsel %vm168, %v32, 0
  %v203 = vsel %vm168, %v33, 0
  %v206 = vsel %vm168, %v34, 0
  %v209 = vsel %vm168, %v35, 0
  %v212 = vsel %vm168, %v36, 0
  %v215 = vsel %vm168, %v37, 0
  %v218 = vsel %vm168, %v38, 0
  %v221 = vsel %vm168, %v39, 0
  %v224 = vsel %vm168, %v40, 0
  %v227 = vsel %vm168, %v41, 0
  %v230 = vsel %vm168, %v42, 0
  %v233 = vsel %vm168, %v43, 0
  %v236 = vsel %vm168, %v44, 0
  %v239 = vsel %vm168, %v45, 0
  %v242 = vsel %vm168, %v46, 0
  %v245 = vsel %vm168, %v47, 0
  %v248 = vsel %vm168, %v48, 0
  %v251 = vsel %vm168, %v49, 0
  %v254 = vsel %vm168, %v50, 0
  %v257 = vsel %vm168, %v51, 0
  %v260 = vsel %vm168, %v52, 0
  %v263 = vsel %vm168, %v53, 0
  %v266 = vsel %vm168, %v54, 0
  %v269 = vsel %vm168, %v55, 0
  %v272 = vsel %vm168, %v56, 0
  %v275 = vsel %vm168, %v57, 0
  %v278 = vsel %vm168, %v58, 0
  %v281 = vsel %vm168, %v59, 0
  %v284 = vsel %vm168, %v60, 0
  %v287 = vsel %vm168, %v61, 0
  %v290 = vsel %vm168, %v62, 0
  %v293 = vsel %vm168, %v63, 0
  %v296 = vsel %vm168, %v64, 0
  %v299 = vsel %vm168, %v65, 0
  %v302 = vsel %vm168, %v66, 0
  %v305 = vsel %vm168, %v67, 0
  %v308 = vsel %vm168, %v68, 0
  %v311 = vsel %vm168, %v69, 0
  %v314 = vsel %vm168, %v70, 0
  %v317 = vsel %vm168, %v71, 0
  %v320 = vsel %vm168, %v72, 0
  %v323 = vsel %vm168, %v73, 0
  %v326 = vsel %vm168, %v74, 0
  %v329 = vsel %vm168, %v75, 0
  %v332 = vsel %vm168, %v76, 0
  %v335 = vsel %vm168, %v77, 0
  %v338 = vsel %vm168, %v78, 0
  %v341 = vsel %vm168, %v79, 0
  %v344 = vsel %vm168, %v80, 0
  %v347 = vsel %vm168, %v81, 0
  %v350 = vsel %vm168, %v82, 0
  %v353 = vsel %vm168, %v83, 0
  %v356 = vsel %vm168, %v84, 0
  %v359 = vsel %vm168, %v85, 0
  %v362 = vsel %vm168, %v86, 0
  %v365 = vsel %vm168, %v87, 0
  %v368 = vsel %vm168, %v88, 0
  %v371 = vsel %vm168, %v89, 0
  %v374 = vsel %vm168, %v90, 0
  %v377 = vsel %vm168, %v91, 0
  %v380 = vsel %vm168, %v92, 0
  %v383 = vsel %vm168, %v93, 0
  %v386 = vsel %vm168, %v94, 0
  %v389 = vsel %vm168, %v95, 0
  %v392 = vsel %vm168, %v96, 0
  %v395 = vsel %vm168, %v97, 0
  %v398 = vsel %vm168, %v98, 0
  %v401 = vsel %vm168, %v99, 0
  %v404 = vsel %vm168, %v100, 0
  %v407 = vsel %vm168, %v101, 0
  %v410 = vsel %vm168, %v102, 0
  %v413 = vsel %vm168, %v103, 0
  %v416 = vsel %vm168, %v104, 0
  %v419 = vsel %vm168, %v105, 0
  %v422 = vsel %vm168, %v106, 0
  %v425 = vsel %vm168, %v107, 0
  %v428 = vsel %vm168, %v108, 0
  %v431 = vsel %vm168, %v109, 0
  %v434 = vsel %vm168, %v110, 0
  %v437 = vsel %vm168, %v111, 0
  %v440 = vsel %vm168, %v112, 0
  %v443 = vsel %vm168, %v113, 0
  %v446 = vsel %vm168, %v114, 0
  %v449 = vsel %vm168, %v115, 0
  %v452 = vsel %vm168, %v116, 0
  %v455 = vsel %vm168, %v117, 0
  %v458 = vsel %vm168, %v118, 0
  %v461 = vsel %vm168, %v119, 0
  %v464 = vsel %vm168, %v120, 0
  %v467 = vsel %vm168, %v121, 0
  %v470 = vsel %vm168, %v122, 0
  %v473 = vsel %vm168, %v123, 0
  %v476 = vsel %vm168, %v124, 0
  %v479 = vsel %vm168, %v125, 0
  %v482 = vsel %vm168, %v126, 0
  %v485 = vsel %vm168, %v127, 0
  %v488 = vsel %vm168, %v128, 0
  %v491 = vsel %vm168, %v129, 0
  %v494 = vsel %vm168, %v130, 0
  %v497 = vsel %vm168, %v131, 0
  %v500 = vsel %vm168, %v132, 0
  %v503 = vsel %vm168, %v133, 0
  %v506 = vsel %vm168, %v134, 0
  %v509 = vsel %vm168, %v135, 0
  %v512 = vsel %vm168, %v136, 0
  %v515 = vsel %vm168, %v137, 0
  %v518 = vsel %vm168, %v138, 0
  %v521 = vsel %vm168, %v139, 0
  %v524 = vsel %vm168, %v140, 0
  %v527 = vsel %vm168, %v141, 0
  %v530 = vsel %vm168, %v142, 0
  %v533 = vsel %vm168, %v143, 0
  %v536 = vsel %vm168, %v144, 0
  %v539 = vsel %vm168, %v145, 0
  %v542 = vsel %vm168, %v146, 0
  %v545 = vsel %vm168, %v147, 0
  %v548 = vsel %vm168, %v148, 0
  %v551 = vsel %vm168, %v149, 0
  %v554 = vsel %vm168, %v150, 0
  %v557 = vsel %vm168, %v151, 0
  %559 = vmatprep.subr.mxu0 0.0
  %560 = vmatpush1.xpose.msra.mxu0 %v176
  %561 = vmatprep.subr.mxu0 0.0
  %562 = vmatpush1.xpose.msra.mxu0 %v179
  %563 = vmatprep.subr.mxu0 0.0
  %564 = vmatpush1.xpose.msra.mxu0 %v182
  %565 = vmatprep.subr.mxu0 0.0
  %566 = vmatpush1.xpose.msra.mxu0 %v185
  %567 = vmatprep.subr.mxu0 0.0
  %568 = vmatpush1.xpose.msra.mxu0 %v188
  %569 = vmatprep.subr.mxu0 0.0
  %570 = vmatpush1.xpose.msra.mxu0 %v191
  %571 = vmatprep.subr.mxu0 0.0
  %572 = vmatpush1.xpose.msra.mxu0 %v194
  %573 = vmatprep.subr.mxu0 0.0
  %574 = vmatpush1.xpose.msra.mxu0 %v197
  %575 = vmatprep.subr.mxu0 0.0
  %576 = vmatpush1.xpose.msra.mxu0 %v200
  %577 = vmatprep.subr.mxu0 0.0
  %578 = vmatpush1.xpose.msra.mxu0 %v203
  %579 = vmatprep.subr.mxu0 0.0
  %580 = vmatpush1.xpose.msra.mxu0 %v206
  %581 = vmatprep.subr.mxu0 0.0
  %582 = vmatpush1.xpose.msra.mxu0 %v209
  %583 = vmatprep.subr.mxu0 0.0
  %584 = vmatpush1.xpose.msra.mxu0 %v212
  %585 = vmatprep.subr.mxu0 0.0
  %586 = vmatpush1.xpose.msra.mxu0 %v215
  %587 = vmatprep.subr.mxu0 0.0
  %588 = vmatpush1.xpose.msra.mxu0 %v218
  %589 = vmatprep.subr.mxu0 0.0
  %590 = vmatpush1.xpose.msra.mxu0 %v221
  %591 = vmatprep.subr.mxu0 0.0
  %592 = vmatpush1.xpose.msra.mxu0 %v224
  %593 = vmatprep.subr.mxu0 0.0
  %594 = vmatpush1.xpose.msra.mxu0 %v227
  %595 = vmatprep.subr.mxu0 0.0
  %596 = vmatpush1.xpose.msra.mxu0 %v230
  %597 = vmatprep.subr.mxu0 0.0
  %598 = vmatpush1.xpose.msra.mxu0 %v233
  %599 = vmatprep.subr.mxu0 0.0
  %600 = vmatpush1.xpose.msra.mxu0 %v236
  %601 = vmatprep.subr.mxu0 0.0
  %602 = vmatpush1.xpose.msra.mxu0 %v239
  %603 = vmatprep.subr.mxu0 0.0
  %604 = vmatpush1.xpose.msra.mxu0 %v242
  %605 = vmatprep.subr.mxu0 0.0
  %606 = vmatpush1.xpose.msra.mxu0 %v245
  %607 = vmatprep.subr.mxu0 0.0
  %608 = vmatpush1.xpose.msra.mxu0 %v248
  %609 = vmatprep.subr.mxu0 0.0
  %610 = vmatpush1.xpose.msra.mxu0 %v251
  %611 = vmatprep.subr.mxu0 0.0
  %612 = vmatpush1.xpose.msra.mxu0 %v254
  %613 = vmatprep.subr.mxu0 0.0
  %614 = vmatpush1.xpose.msra.mxu0 %v257
  %615 = vmatprep.subr.mxu0 0.0
  %616 = vmatpush1.xpose.msra.mxu0 %v260
  %617 = vmatprep.subr.mxu0 0.0
  %618 = vmatpush1.xpose.msra.mxu0 %v263
  %619 = vmatprep.subr.mxu0 0.0
  %620 = vmatpush1.xpose.msra.mxu0 %v266
  %621 = vmatprep.subr.mxu0 0.0
  %622 = vmatpush1.xpose.msra.mxu0 %v269
  %623 = vmatprep.mubr.f32.mxu0 0.0
  %624 = vmatmul.mubr.f32.gmra.mrb[0].mxu0 %v170
  %v625 = vpop.f32.mrb[0].mxu0
  %v626 = vadd.f32 %v152, %v625
  %v627 = vpop.f32.mrb[0].mxu0
  %v628 = vadd.f32 %v153, %v627
  %629 = vmatprep.mubr.f32.mxu0 0.0
  %630 = vmatmul.mubr.f32.gmra.mrb[0].mxu0 %v173
  %v631 = vpop.f32.mrb[0].mxu0
  %v632 = vadd.f32 %v160, %v631
  %v633 = vpop.f32.mrb[0].mxu0
  %v634 = vadd.f32 %v161, %v633
  %635 = vdwg.mxu0
  %636 = vmatprep.subr.mxu0 0.0
  %637 = vmatpush1.xpose.msra.mxu0 %v272
  %638 = vmatprep.subr.mxu0 0.0
  %639 = vmatpush1.xpose.msra.mxu0 %v275
  %640 = vmatprep.subr.mxu0 0.0
  %641 = vmatpush1.xpose.msra.mxu0 %v278
  %642 = vmatprep.subr.mxu0 0.0
  %643 = vmatpush1.xpose.msra.mxu0 %v281
  %644 = vmatprep.subr.mxu0 0.0
  %645 = vmatpush1.xpose.msra.mxu0 %v284
  %646 = vmatprep.subr.mxu0 0.0
  %647 = vmatpush1.xpose.msra.mxu0 %v287
  %648 = vmatprep.subr.mxu0 0.0
  %649 = vmatpush1.xpose.msra.mxu0 %v290
  %650 = vmatprep.subr.mxu0 0.0
  %651 = vmatpush1.xpose.msra.mxu0 %v293
  %652 = vmatprep.subr.mxu0 0.0
  %653 = vmatpush1.xpose.msra.mxu0 %v296
  %654 = vmatprep.subr.mxu0 0.0
  %655 = vmatpush1.xpose.msra.mxu0 %v299
  %656 = vmatprep.subr.mxu0 0.0
  %657 = vmatpush1.xpose.msra.mxu0 %v302
  %658 = vmatprep.subr.mxu0 0.0
  %659 = vmatpush1.xpose.msra.mxu0 %v305
  %660 = vmatprep.subr.mxu0 0.0
  %661 = vmatpush1.xpose.msra.mxu0 %v308
  %662 = vmatprep.subr.mxu0 0.0
  %663 = vmatpush1.xpose.msra.mxu0 %v311
  %664 = vmatprep.subr.mxu0 0.0
  %665 = vmatpush1.xpose.msra.mxu0 %v314
  %666 = vmatprep.subr.mxu0 0.0
  %667 = vmatpush1.xpose.msra.mxu0 %v317
  %668 = vmatprep.subr.mxu0 0.0
  %669 = vmatpush1.xpose.msra.mxu0 %v320
  %670 = vmatprep.subr.mxu0 0.0
  %671 = vmatpush1.xpose.msra.mxu0 %v323
  %672 = vmatprep.subr.mxu0 0.0
  %673 = vmatpush1.xpose.msra.mxu0 %v326
  %674 = vmatprep.subr.mxu0 0.0
  %675 = vmatpush1.xpose.msra.mxu0 %v329
  %676 = vmatprep.subr.mxu0 0.0
  %677 = vmatpush1.xpose.msra.mxu0 %v332
  %678 = vmatprep.subr.mxu0 0.0
  %679 = vmatpush1.xpose.msra.mxu0 %v335
  %680 = vmatprep.subr.mxu0 0.0
  %681 = vmatpush1.xpose.msra.mxu0 %v338
  %682 = vmatprep.subr.mxu0 0.0
  %683 = vmatpush1.xpose.msra.mxu0 %v341
  %684 = vmatprep.subr.mxu0 0.0
  %685 = vmatpush1.xpose.msra.mxu0 %v344
  %686 = vmatprep.subr.mxu0 0.0
  %687 = vmatpush1.xpose.msra.mxu0 %v347
  %688 = vmatprep.subr.mxu0 0.0
  %689 = vmatpush1.xpose.msra.mxu0 %v350
  %690 = vmatprep.subr.mxu0 0.0
  %691 = vmatpush1.xpose.msra.mxu0 %v353
  %692 = vmatprep.subr.mxu0 0.0
  %693 = vmatpush1.xpose.msra.mxu0 %v356
  %694 = vmatprep.subr.mxu0 0.0
  %695 = vmatpush1.xpose.msra.mxu0 %v359
  %696 = vmatprep.subr.mxu0 0.0
  %697 = vmatpush1.xpose.msra.mxu0 %v362
  %698 = vmatprep.subr.mxu0 0.0
  %699 = vmatpush1.xpose.msra.mxu0 %v365
  %700 = vmatprep.mubr.f32.mxu0 0.0
  %701 = vmatmul.mubr.f32.gmra.mrb[0].mxu0 %v170
  %v702 = vpop.f32.mrb[0].mxu0
  %v703 = vadd.f32 %v154, %v702
  %v704 = vpop.f32.mrb[0].mxu0
  %v705 = vadd.f32 %v155, %v704
  %706 = vmatprep.mubr.f32.mxu0 0.0
  %707 = vmatmul.mubr.f32.gmra.mrb[0].mxu0 %v173
  %v708 = vpop.f32.mrb[0].mxu0
  %v709 = vadd.f32 %v162, %v708
  %v710 = vpop.f32.mrb[0].mxu0
  %v711 = vadd.f32 %v163, %v710
  %712 = vdwg.mxu0
  %713 = vmatprep.subr.mxu0 0.0
  %714 = vmatpush1.xpose.msra.mxu0 %v368
  %715 = vmatprep.subr.mxu0 0.0
  %716 = vmatpush1.xpose.msra.mxu0 %v371
  %717 = vmatprep.subr.mxu0 0.0
  %718 = vmatpush1.xpose.msra.mxu0 %v374
  %719 = vmatprep.subr.mxu0 0.0
  %720 = vmatpush1.xpose.msra.mxu0 %v377
  %721 = vmatprep.subr.mxu0 0.0
  %722 = vmatpush1.xpose.msra.mxu0 %v380
  %723 = vmatprep.subr.mxu0 0.0
  %724 = vmatpush1.xpose.msra.mxu0 %v383
  %725 = vmatprep.subr.mxu0 0.0
  %726 = vmatpush1.xpose.msra.mxu0 %v386
  %727 = vmatprep.subr.mxu0 0.0
  %728 = vmatpush1.xpose.msra.mxu0 %v389
  %729 = vmatprep.subr.mxu0 0.0
  %730 = vmatpush1.xpose.msra.mxu0 %v392
  %731 = vmatprep.subr.mxu0 0.0
  %732 = vmatpush1.xpose.msra.mxu0 %v395
  %733 = vmatprep.subr.mxu0 0.0
  %734 = vmatpush1.xpose.msra.mxu0 %v398
  %735 = vmatprep.subr.mxu0 0.0
  %736 = vmatpush1.xpose.msra.mxu0 %v401
  %737 = vmatprep.subr.mxu0 0.0
  %738 = vmatpush1.xpose.msra.mxu0 %v404
  %739 = vmatprep.subr.mxu0 0.0
  %740 = vmatpush1.xpose.msra.mxu0 %v407
  %741 = vmatprep.subr.mxu0 0.0
  %742 = vmatpush1.xpose.msra.mxu0 %v410
  %743 = vmatprep.subr.mxu0 0.0
  %744 = vmatpush1.xpose.msra.mxu0 %v413
  %745 = vmatprep.subr.mxu0 0.0
  %746 = vmatpush1.xpose.msra.mxu0 %v416
  %747 = vmatprep.subr.mxu0 0.0
  %748 = vmatpush1.xpose.msra.mxu0 %v419
  %749 = vmatprep.subr.mxu0 0.0
  %750 = vmatpush1.xpose.msra.mxu0 %v422
  %751 = vmatprep.subr.mxu0 0.0
  %752 = vmatpush1.xpose.msra.mxu0 %v425
  %753 = vmatprep.subr.mxu0 0.0
  %754 = vmatpush1.xpose.msra.mxu0 %v428
  %755 = vmatprep.subr.mxu0 0.0
  %756 = vmatpush1.xpose.msra.mxu0 %v431
  %757 = vmatprep.subr.mxu0 0.0
  %758 = vmatpush1.xpose.msra.mxu0 %v434
  %759 = vmatprep.subr.mxu0 0.0
  %760 = vmatpush1.xpose.msra.mxu0 %v437
  %761 = vmatprep.subr.mxu0 0.0
  %762 = vmatpush1.xpose.msra.mxu0 %v440
  %763 = vmatprep.subr.mxu0 0.0
  %764 = vmatpush1.xpose.msra.mxu0 %v443
  %765 = vmatprep.subr.mxu0 0.0
  %766 = vmatpush1.xpose.msra.mxu0 %v446
  %767 = vmatprep.subr.mxu0 0.0
  %768 = vmatpush1.xpose.msra.mxu0 %v449
  %769 = vmatprep.subr.mxu0 0.0
  %770 = vmatpush1.xpose.msra.mxu0 %v452
  %771 = vmatprep.subr.mxu0 0.0
  %772 = vmatpush1.xpose.msra.mxu0 %v455
  %773 = vmatprep.subr.mxu0 0.0
  %774 = vmatpush1.xpose.msra.mxu0 %v458
  %775 = vmatprep.subr.mxu0 0.0
  %776 = vmatpush1.xpose.msra.mxu0 %v461
  %777 = vmatprep.mubr.f32.mxu0 0.0
  %778 = vmatmul.mubr.f32.gmra.mrb[0].mxu0 %v170
  %v779 = vpop.f32.mrb[0].mxu0
  %v780 = vadd.f32 %v156, %v779
  %v781 = vpop.f32.mrb[0].mxu0
  %v782 = vadd.f32 %v157, %v781
  %783 = vmatprep.mubr.f32.mxu0 0.0
  %784 = vmatmul.mubr.f32.gmra.mrb[0].mxu0 %v173
  %v785 = vpop.f32.mrb[0].mxu0
  %v786 = vadd.f32 %v164, %v785
  %v787 = vpop.f32.mrb[0].mxu0
  %v788 = vadd.f32 %v165, %v787
  %789 = vdwg.mxu0
  %790 = vmatprep.subr.mxu0 0.0
  %791 = vmatpush1.xpose.msra.mxu0 %v464
  %792 = vmatprep.subr.mxu0 0.0
  %793 = vmatpush1.xpose.msra.mxu0 %v467
  %794 = vmatprep.subr.mxu0 0.0
  %795 = vmatpush1.xpose.msra.mxu0 %v470
  %796 = vmatprep.subr.mxu0 0.0
  %797 = vmatpush1.xpose.msra.mxu0 %v473
  %798 = vmatprep.subr.mxu0 0.0
  %799 = vmatpush1.xpose.msra.mxu0 %v476
  %800 = vmatprep.subr.mxu0 0.0
  %801 = vmatpush1.xpose.msra.mxu0 %v479
  %802 = vmatprep.subr.mxu0 0.0
  %803 = vmatpush1.xpose.msra.mxu0 %v482
  %804 = vmatprep.subr.mxu0 0.0
  %805 = vmatpush1.xpose.msra.mxu0 %v485
  %806 = vmatprep.subr.mxu0 0.0
  %807 = vmatpush1.xpose.msra.mxu0 %v488
  %808 = vmatprep.subr.mxu0 0.0
  %809 = vmatpush1.xpose.msra.mxu0 %v491
  %810 = vmatprep.subr.mxu0 0.0
  %811 = vmatpush1.xpose.msra.mxu0 %v494
  %812 = vmatprep.subr.mxu0 0.0
  %813 = vmatpush1.xpose.msra.mxu0 %v497
  %814 = vmatprep.subr.mxu0 0.0
  %815 = vmatpush1.xpose.msra.mxu0 %v500
  %816 = vmatprep.subr.mxu0 0.0
  %817 = vmatpush1.xpose.msra.mxu0 %v503
  %818 = vmatprep.subr.mxu0 0.0
  %819 = vmatpush1.xpose.msra.mxu0 %v506
  %820 = vmatprep.subr.mxu0 0.0
  %821 = vmatpush1.xpose.msra.mxu0 %v509
  %822 = vmatprep.subr.mxu0 0.0
  %823 = vmatpush1.xpose.msra.mxu0 %v512
  %824 = vmatprep.subr.mxu0 0.0
  %825 = vmatpush1.xpose.msra.mxu0 %v515
  %826 = vmatprep.subr.mxu0 0.0
  %827 = vmatpush1.xpose.msra.mxu0 %v518
  %828 = vmatprep.subr.mxu0 0.0
  %829 = vmatpush1.xpose.msra.mxu0 %v521
  %830 = vmatprep.subr.mxu0 0.0
  %831 = vmatpush1.xpose.msra.mxu0 %v524
  %832 = vmatprep.subr.mxu0 0.0
  %833 = vmatpush1.xpose.msra.mxu0 %v527
  %834 = vmatprep.subr.mxu0 0.0
  %835 = vmatpush1.xpose.msra.mxu0 %v530
  %836 = vmatprep.subr.mxu0 0.0
  %837 = vmatpush1.xpose.msra.mxu0 %v533
  %838 = vmatprep.subr.mxu0 0.0
  %839 = vmatpush1.xpose.msra.mxu0 %v536
  %840 = vmatprep.subr.mxu0 0.0
  %841 = vmatpush1.xpose.msra.mxu0 %v539
  %842 = vmatprep.subr.mxu0 0.0
  %843 = vmatpush1.xpose.msra.mxu0 %v542
  %844 = vmatprep.subr.mxu0 0.0
  %845 = vmatpush1.xpose.msra.mxu0 %v545
  %846 = vmatprep.subr.mxu0 0.0
  %847 = vmatpush1.xpose.msra.mxu0 %v548
  %848 = vmatprep.subr.mxu0 0.0
  %849 = vmatpush1.xpose.msra.mxu0 %v551
  %850 = vmatprep.subr.mxu0 0.0
  %851 = vmatpush1.xpose.msra.mxu0 %v554
  %852 = vmatprep.subr.mxu0 0.0
  %853 = vmatpush1.xpose.msra.mxu0 %v557
  %854 = vmatprep.mubr.f32.mxu0 0.0
  %855 = vmatmul.mubr.f32.gmra.mrb[0].mxu0 %v170
  %v856 = vpop.f32.mrb[0].mxu0
  %v857 = vadd.f32 %v158, %v856
  %v858 = vpop.f32.mrb[0].mxu0
  %v859 = vadd.f32 %v159, %v858
  %860 = vmatprep.mubr.f32.mxu0 0.0
  %861 = vmatmul.mubr.f32.gmra.mrb[0].mxu0 %v173
  %v862 = vpop.f32.mrb[0].mxu0
  %v863 = vadd.f32 %v166, %v862
  %v864 = vpop.f32.mrb[0].mxu0
  %v865 = vadd.f32 %v167, %v864
  %866 = vdwg.mxu0
  %v867 = vmax.f32 %v626, 0.0
  %v868 = vmax.f32 %v628, 0.0
  %v869 = vmax.f32 %v703, 0.0
  %v870 = vmax.f32 %v705, 0.0
  %v871 = vmax.f32 %v780, 0.0
  %v872 = vmax.f32 %v782, 0.0
  %v873 = vmax.f32 %v857, 0.0
  %v874 = vmax.f32 %v859, 0.0
  %v875 = vmax.f32 %v632, 0.0
  %v876 = vmax.f32 %v634, 0.0
  %v877 = vmax.f32 %v709, 0.0
  %v878 = vmax.f32 %v711, 0.0
  %v879 = vmax.f32 %v786, 0.0
  %v880 = vmax.f32 %v788, 0.0
  %v881 = vmax.f32 %v863, 0.0
  %v882 = vmax.f32 %v865, 0.0
  %v883 = vld [vmem:[%s3] sm:$0xff]
  %v884 = vld [vmem:[%s3 + $0x8] sm:$0xff]
  %v885 = vld [vmem:[%s3 + $0x10] sm:$0xff]
  %v886 = vld [vmem:[%s3 + $0x18] sm:$0xff]
  %v887 = vld [vmem:[%s3 + $0x20] sm:$0xff]
  %v888 = vld [vmem:[%s3 + $0x28] sm:$0xff]
  %v889 = vld [vmem:[%s3 + $0x30] sm:$0xff]
  %v890 = vld [vmem:[%s3 + $0x38] sm:$0xff]
  %v891 = vld [vmem:[%s3 + $0x40] sm:$0x7f]
  %v892 = vld [vmem:[%s3 + $0x48] sm:$0x7f]
  %v893 = vld [vmem:[%s3 + $0x50] sm:$0x7f]
  %v894 = vld [vmem:[%s3 + $0x58] sm:$0x7f]
  %v895 = vld [vmem:[%s3 + $0x60] sm:$0x7f]
  %v896 = vld [vmem:[%s3 + $0x68] sm:$0x7f]
  %v897 = vld [vmem:[%s3 + $0x70] sm:$0x7f]
  %v898 = vld [vmem:[%s3 + $0x78] sm:$0x7f]
  %v899 = vmul.f32 %v867, %v883
  %v900 = vmul.f32 %v868, %v884
  %v901 = vmul.f32 %v869, %v885
  %v902 = vmul.f32 %v870, %v886
  %v903 = vmul.f32 %v871, %v887
  %v904 = vmul.f32 %v872, %v888
  %v905 = vmul.f32 %v873, %v889
  %v906 = vmul.f32 %v874, %v890
  %v907 = vmul.f32 %v875, %v891
  %v908 = vmul.f32 %v876, %v892
  %v909 = vmul.f32 %v877, %v893
  %v910 = vmul.f32 %v878, %v894
  %v911 = vmul.f32 %v879, %v895
  %v912 = vmul.f32 %v880, %v896
  %v913 = vmul.f32 %v881, %v897
  %v914 = vmul.f32 %v882, %v898
  %vm915 = vcmask 1046528
  %v916 = vsel %vm915, %v907, 0.0
  %v917 = vadd.f32 %v899, %v916
  %v918 = vrot.slane %v917, 4
  %v919 = vadd.f32 %v917, %v918
  %v920 = vrot.slane %v919, 2
  %v921 = vadd.f32 %v919, %v920
  %v922 = vrot.slane %v921, 1
  %v923 = vadd.f32 %v921, %v922
  %v924 = vsel %vm915, %v908, 0.0
  %v925 = vadd.f32 %v900, %v924
  %v926 = vrot.slane %v925, 4
  %v927 = vadd.f32 %v925, %v926
  %v928 = vrot.slane %v927, 2
  %v929 = vadd.f32 %v927, %v928
  %v930 = vrot.slane %v929, 1
  %v931 = vadd.f32 %v929, %v930
  %v932 = vsel %vm915, %v909, 0.0
  %v933 = vadd.f32 %v901, %v932
  %v934 = vrot.slane %v933, 4
  %v935 = vadd.f32 %v933, %v934
  %v936 = vrot.slane %v935, 2
  %v937 = vadd.f32 %v935, %v936
  %v938 = vrot.slane %v937, 1
  %v939 = vadd.f32 %v937, %v938
  %v940 = vsel %vm915, %v910, 0.0
  %v941 = vadd.f32 %v902, %v940
  %v942 = vrot.slane %v941, 4
  %v943 = vadd.f32 %v941, %v942
  %v944 = vrot.slane %v943, 2
  %v945 = vadd.f32 %v943, %v944
  %v946 = vrot.slane %v945, 1
  %v947 = vadd.f32 %v945, %v946
  %v948 = vsel %vm915, %v911, 0.0
  %v949 = vadd.f32 %v903, %v948
  %v950 = vrot.slane %v949, 4
  %v951 = vadd.f32 %v949, %v950
  %v952 = vrot.slane %v951, 2
  %v953 = vadd.f32 %v951, %v952
  %v954 = vrot.slane %v953, 1
  %v955 = vadd.f32 %v953, %v954
  %v956 = vsel %vm915, %v912, 0.0
  %v957 = vadd.f32 %v904, %v956
  %v958 = vrot.slane %v957, 4
  %v959 = vadd.f32 %v957, %v958
  %v960 = vrot.slane %v959, 2
  %v961 = vadd.f32 %v959, %v960
  %v962 = vrot.slane %v961, 1
  %v963 = vadd.f32 %v961, %v962
  %v964 = vsel %vm915, %v913, 0.0
  %v965 = vadd.f32 %v905, %v964
  %v966 = vrot.slane %v965, 4
  %v967 = vadd.f32 %v965, %v966
  %v968 = vrot.slane %v967, 2
  %v969 = vadd.f32 %v967, %v968
  %v970 = vrot.slane %v969, 1
  %v971 = vadd.f32 %v969, %v970
  %v972 = vsel %vm915, %v914, 0.0
  %v973 = vadd.f32 %v906, %v972
  %v974 = vrot.slane %v973, 4
  %v975 = vadd.f32 %v973, %v974
  %v976 = vrot.slane %v975, 2
  %v977 = vadd.f32 %v975, %v976
  %v978 = vrot.slane %v977, 1
  %v979 = vadd.f32 %v977, %v978
  %v980 = vstv %s23
  %v981 = vadd.f32 %v923, %v980
  %v982 = vadd.f32 %v931, %v980
  %v983 = vadd.f32 %v939, %v980
  %v984 = vadd.f32 %v947, %v980
  %v985 = vadd.f32 %v955, %v980
  %v986 = vadd.f32 %v963, %v980
  %v987 = vadd.f32 %v971, %v980
  %v988 = vadd.f32 %v979, %v980
  %v997 = vcombine.low %v981, %v982
  %v998 = vcombine.low %v983, %v984
  %v999 = vcombine.low %v985, %v986
  %v1000 = vcombine.low %v987, %v988
  %v1002 = vunpack.c.l.s4 1966171168
  %v1003 = vunpack.c.0.s8 %v1002
  %v1004 = vlaneseq
  %v1005 = vshrl.u32 %v1004, 7
  %v1006 = vsub.s32 %v1003, %v1005
  %v1007 = vrot.slane %v997, %v1006
  %v1009 = vunpack.c.l.s4 1966171168
  %v1010 = vunpack.c.0.s8 %v1009
  %v1011 = vlaneseq
  %v1012 = vshrl.u32 %v1011, 7
  %v1013 = vsub.s32 %v1010, %v1012
  %v1014 = vrot.slane %v998, %v1013
  %v1016 = vunpack.c.l.s4 1966171168
  %v1017 = vunpack.c.0.s8 %v1016
  %v1018 = vlaneseq
  %v1019 = vshrl.u32 %v1018, 7
  %v1020 = vsub.s32 %v1017, %v1019
  %v1021 = vrot.slane %v999, %v1020
  %v1023 = vunpack.c.l.s4 1966171168
  %v1024 = vunpack.c.0.s8 %v1023
  %v1025 = vlaneseq
  %v1026 = vshrl.u32 %v1025, 7
  %v1027 = vsub.s32 %v1024, %v1026
  %v1028 = vrot.slane %v1000, %v1027
  %v1029 = vcombine.low %v1007, %v1014
  %v1030 = vcombine.low %v1021, %v1028
  %v1032 = vunpack.c.l.s4 1966171168
  %v1033 = vunpack.c.0.s8 %v1032
  %v1034 = vlaneseq
  %v1035 = vshrl.u32 %v1034, 7
  %v1036 = vsub.s32 %v1033, %v1035
  %v1037 = vrot.slane %v1029, %v1036
  %v1039 = vunpack.c.l.s4 1966171168
  %v1040 = vunpack.c.0.s8 %v1039
  %v1041 = vlaneseq
  %v1042 = vshrl.u32 %v1041, 7
  %v1043 = vsub.s32 %v1040, %v1042
  %v1044 = vrot.slane %v1030, %v1043
  %v1045 = vcombine.low %v1037, %v1044
  %1047 = vst [vmem:[%s5] sm:$0xff] %v1045
  // Predicated region
  $region22: #{lr_fcn_forward.1} parent=0 // pred_check
    _
  $region23: #{lr_fcn_forward.1} parent=0 // pred_check_branch
    %1049 = sbr.rel (0) target = $region25
  $region24: #{lr_fcn_forward.1} parent=0 // pred_region
    _
  $region25: #{lr_fcn_forward.1} parent=0 // pred_fallthru
    _
  // Predicated region
  $region26: #{lr_fcn_forward.1} parent=0 // pred_check
    _
  $region27: #{lr_fcn_forward.1} parent=0 // pred_check_branch
    %1051 = sbr.rel (0) target = $region29
  $region28: #{lr_fcn_forward.1} parent=0 // pred_region
    _
  $region29: #{lr_fcn_forward.1} parent=0 // pred_fallthru
    _

</llo_original>
